<compile_context>
chip_gen: v7x
topology: tpu7x:2x2x1
jax: 0.10.0
libtpu: 0.0.40
codegen_flags: <defaults>
</compile_context>

<pallas_src>
import jax
import jax.numpy as jnp
from jax.experimental import pallas as pl
from jax.experimental.pallas import tpu as pltpu


def predictor_kernel(z_ref, w1_ref, b1_ref, w2_ref, b2_ref, o_ref):
    TB, T, Fin = z_ref.shape
    H = w1_ref.shape[1]

    # relu(z) in f32 (safe on v5e), then cast only the matmul operand.
    zr = jnp.maximum(z_ref[...], 0.0)                       # (TB, T, Fin) f32
    zr = zr.reshape(TB * T, Fin).astype(w1_ref.dtype)       # copy-free when T % 8 == 0

    # linear_1 on the MXU with f32 accumulation, bias + relu fused epilogue.
    h = jnp.dot(zr, w1_ref[...],
                preferred_element_type=jnp.float32)         # (TB*T, H) f32
    h = jnp.maximum(h + b1_ref[...], 0.0)                   # b1 (1, H) broadcasts

    # transpose(1,2) + adaptive_avg_pool1d(., 1) + squeeze == mean over T.
    pooled = jnp.mean(h.reshape(TB, T, H), axis=1)          # (TB, H) f32

    # linear_2 + sigmoid * 2 (OUT dim pre-padded to 128 lanes by the wrapper).
    logits = jnp.dot(pooled, w2_ref[...],
                     preferred_element_type=jnp.float32)    # (TB, OUT_pad)
    logits = logits + b2_ref[...]                           # b2 (1, OUT_pad)
    o_ref[...] = (2.0 * jax.nn.sigmoid(logits)).astype(o_ref.dtype)


def predictor_forward(z, w1, b1, w2, b2, *, block_b=64, compute_dtype=None):
    """z: (B, T, Fin). w1: (Fin, H), b1: (1, H), w2: (H, OUT), b2: (1, OUT)."""
    B, T, Fin = z.shape
    H = w1.shape[1]
    OUT = w2.shape[1]

    # Optional bf16 operands for the first matmul (recommended on v6e / v7x).
    if compute_dtype is not None:
        w1 = w1.astype(compute_dtype)

    # Lane-dense output: pad tiny OUT to a multiple of 128 (zero cols -> sliced off).
    OUT_pad = ((OUT + 127) // 128) * 128
    if OUT_pad != OUT:
        w2 = jnp.pad(w2, ((0, 0), (0, OUT_pad - OUT)))
        b2 = jnp.pad(b2, ((0, 0), (0, OUT_pad - OUT)))

    # Batch tile: full B if small, else 64 rows (multiple of 8, VMEM-safe on v7x).
    TB = B if B <= block_b else block_b
    grid = (pl.cdiv(B, TB),)

    def nbytes(a):
        return a.size * a.dtype.itemsize

    cost = pl.CostEstimate(
        flops=2 * B * T * Fin * H + 2 * B * H * OUT_pad,
        transcendentals=B * OUT_pad,                        # sigmoid -> exp
        bytes_accessed=(nbytes(z) + nbytes(w1) + nbytes(b1) + nbytes(w2)
                        + nbytes(b2) + B * OUT_pad * 4),
    )

    out = pl.pallas_call(
        predictor_kernel,
        out_shape=jax.ShapeDtypeStruct((B, OUT_pad), jnp.float32),
        grid=grid,
        in_specs=[
            pl.BlockSpec((TB, T, Fin), lambda i: (i, 0, 0)),   # batch-tiled
            pl.BlockSpec((Fin, H), lambda i: (0, 0)),          # resident weights
            pl.BlockSpec((1, H), lambda i: (0, 0)),
            pl.BlockSpec((H, OUT_pad), lambda i: (0, 0)),
            pl.BlockSpec((1, OUT_pad), lambda i: (0, 0)),
        ],
        out_specs=pl.BlockSpec((TB, OUT_pad), lambda i: (i, 0)),
        compiler_params=pltpu.CompilerParams(
            dimension_semantics=("parallel",),                 # megacore on v7x
            vmem_limit_bytes=32 * 1024 * 1024),                # safe on v5e/v6e/v7x
        cost_estimate=cost,
    )(z, w1, b1, w2, b2)
    return out[:, :OUT]


def reference_forward(z, w1, b1, w2, b2):
    # Pure-JAX reference mirroring the PyTorch module.
    out = jnp.maximum(z, 0.0)
    out = out @ w1 + b1                       # (B, T, H)
    out = jnp.maximum(out, 0.0)
    out = jnp.mean(out, axis=1)               # adaptive_avg_pool1d over T
    out = out @ w2 + b2
    return 2.0 * jax.nn.sigmoid(out)


if __name__ == "__main__":
    # Small shapes consistent with the module: batch=2, seq=8, in=32, hidden=128, out=4
    B, T, IN_F, HID, OUT_F = 2, 8, 32, 128, 4

    key = jax.random.PRNGKey(0)
    kz, kw1, kb1, kw2, kb2 = jax.random.split(key, 5)

    z = jax.random.normal(kz, (B, T, IN_F), dtype=jnp.float32)

    # Deterministic param init (PyTorch Linear-style uniform bounds), stored pre-transposed.
    bound1 = 1.0 / (IN_F ** 0.5)
    w1 = jax.random.uniform(kw1, (IN_F, HID), jnp.float32, -bound1, bound1)
    b1 = jax.random.uniform(kb1, (1, HID), jnp.float32, -bound1, bound1)
    bound2 = 1.0 / (HID ** 0.5)
    w2 = jax.random.uniform(kw2, (HID, OUT_F), jnp.float32, -bound2, bound2)
    b2 = jax.random.uniform(kb2, (1, OUT_F), jnp.float32, -bound2, bound2)

    ref = reference_forward(z, w1, b1[0], w2, b2[0])

    # Full-precision path (exact vs. f32 reference).
    out = jax.block_until_ready(predictor_forward(z, w1, b1, w2, b2))
    assert out.shape == (B, OUT_F), out.shape
    assert jnp.allclose(out, ref, atol=1e-5, rtol=1e-5), (out, ref)

    # bf16 first-matmul operands (v6e/v7x fast path), f32 accumulation.
    out_bf16 = jax.block_until_ready(
        predictor_forward(z, w1, b1, w2, b2, compute_dtype=jnp.bfloat16))
    assert out_bf16.shape == (B, OUT_F), out_bf16.shape
    assert jnp.allclose(out_bf16, ref, atol=2e-2, rtol=2e-2), (out_bf16, ref)

    print("KERNEL_OK")
</pallas_src>

<mosaic_0001>
module attributes {stable_mosaic.version = 11 : i64} {
  func.func @predictor_kernel(%arg0: i32, %arg1: memref<2x8x32xf32, #tpu.memory_space<vmem>>, %arg2: memref<32x128xf32, #tpu.memory_space<vmem>>, %arg3: memref<1x128xf32, #tpu.memory_space<vmem>>, %arg4: memref<128x128xf32, #tpu.memory_space<vmem>>, %arg5: memref<1x128xf32, #tpu.memory_space<vmem>>, %arg6: memref<2x128xf32, #tpu.memory_space<vmem>>) attributes {dimension_semantics = [#tpu.dimension_semantics<parallel>], iteration_bounds = array<i64: 1>, scalar_prefetch = 0 : i64, scratch_operands = 0 : i64, tpu.core_type = #tpu.core_type<tc>, window_params = [{transform_indices = @transform_0, window_bounds = array<i64: 2, 8, 32>}, {pipeline_mode = #tpu.pipeline_mode<synchronous>, transform_indices = @transform_1, window_bounds = array<i64: 32, 128>}, {pipeline_mode = #tpu.pipeline_mode<synchronous>, transform_indices = @transform_2, window_bounds = array<i64: 1, 128>}, {pipeline_mode = #tpu.pipeline_mode<synchronous>, transform_indices = @transform_3, window_bounds = array<i64: 128, 128>}, {pipeline_mode = #tpu.pipeline_mode<synchronous>, transform_indices = @transform_4, window_bounds = array<i64: 1, 128>}, {transform_indices = @transform_5, window_bounds = array<i64: 2, 128>}]} {
    %c0 = arith.constant 0 : index
    %c0_0 = arith.constant 0 : index
    %c0_1 = arith.constant 0 : index
    %0 = vector.load %arg1[%c0, %c0_0, %c0_1] : memref<2x8x32xf32, #tpu.memory_space<vmem>>, vector<2x8x32xf32>
    %cst = arith.constant 0.000000e+00 : f32
    %1 = vector.broadcast %cst : f32 to vector<2x8x32xf32>
    %2 = arith.maximumf %0, %1 : vector<2x8x32xf32>
    %3 = vector.shape_cast %2 : vector<2x8x32xf32> to vector<16x32xf32>
    %c0_2 = arith.constant 0 : index
    %c0_3 = arith.constant 0 : index
    %4 = vector.load %arg2[%c0_2, %c0_3] : memref<32x128xf32, #tpu.memory_space<vmem>>, vector<32x128xf32>
    %cst_4 = arith.constant dense<0.000000e+00> : vector<16x128xf32>
    %5 = tpu.matmul %3, %4, %cst_4 {dimension_numbers = #tpu.dot_dimension_numbers<[1], [0], [0], [1], [0, 0, 1, 1], [], []>} : vector<16x32xf32>, vector<32x128xf32>, vector<16x128xf32> -> vector<16x128xf32>
    %c0_5 = arith.constant 0 : index
    %c0_6 = arith.constant 0 : index
    %6 = vector.load %arg3[%c0_5, %c0_6] : memref<1x128xf32, #tpu.memory_space<vmem>>, vector<1x128xf32>
    %7 = vector.broadcast %6 : vector<1x128xf32> to vector<16x128xf32>
    %8 = arith.addf %5, %7 : vector<16x128xf32>
    %cst_7 = arith.constant 0.000000e+00 : f32
    %9 = vector.broadcast %cst_7 : f32 to vector<16x128xf32>
    %10 = arith.maximumf %8, %9 : vector<16x128xf32>
    %11 = vector.shape_cast %10 : vector<16x128xf32> to vector<2x8x128xf32>
    %cst_8 = arith.constant dense<0.000000e+00> : vector<2x128xf32>
    %12 = vector.multi_reduction <add>, %11, %cst_8 [1] : vector<2x8x128xf32> to vector<2x128xf32>
    %cst_9 = arith.constant 8.000000e+00 : f32
    %13 = vector.broadcast %cst_9 : f32 to vector<2x128xf32>
    %14 = arith.divf %12, %13 : vector<2x128xf32>
    %c0_10 = arith.constant 0 : index
    %c0_11 = arith.constant 0 : index
    %15 = vector.load %arg4[%c0_10, %c0_11] : memref<128x128xf32, #tpu.memory_space<vmem>>, vector<128x128xf32>
    %cst_12 = arith.constant dense<0.000000e+00> : vector<2x128xf32>
    %16 = tpu.matmul %14, %15, %cst_12 {dimension_numbers = #tpu.dot_dimension_numbers<[1], [0], [0], [1], [0, 0, 1, 1], [], []>} : vector<2x128xf32>, vector<128x128xf32>, vector<2x128xf32> -> vector<2x128xf32>
    %c0_13 = arith.constant 0 : index
    %c0_14 = arith.constant 0 : index
    %17 = vector.load %arg5[%c0_13, %c0_14] : memref<1x128xf32, #tpu.memory_space<vmem>>, vector<1x128xf32>
    %18 = vector.broadcast %17 : vector<1x128xf32> to vector<2x128xf32>
    %19 = arith.addf %16, %18 : vector<2x128xf32>
    %20 = arith.negf %19 : vector<2x128xf32>
    %21 = math.exp %20 : vector<2x128xf32>
    %cst_15 = arith.constant 1.000000e+00 : f32
    %22 = vector.broadcast %cst_15 : f32 to vector<2x128xf32>
    %23 = arith.addf %22, %21 : vector<2x128xf32>
    %24 = arith.divf %22, %23 : vector<2x128xf32>
    %cst_16 = arith.constant 2.000000e+00 : f32
    %25 = vector.broadcast %cst_16 : f32 to vector<2x128xf32>
    %26 = arith.mulf %25, %24 : vector<2x128xf32>
    %c0_17 = arith.constant 0 : index
    %c0_18 = arith.constant 0 : index
    %27 = vector.load %arg6[%c0_17, %c0_18] : memref<2x128xf32, #tpu.memory_space<vmem>>, vector<2x128xf32>
    tpu.vector_store %arg6[%c0_17, %c0_18], %26 {strides = array<i32>} : memref<2x128xf32, #tpu.memory_space<vmem>>, vector<2x128xf32>,
    return
  }
  func.func @transform_0(%arg0: i32) -> (i32, i32, i32) {
    %c0_i32 = arith.constant 0 : i32
    %c0_i32_0 = arith.constant 0 : i32
    %c0_i32_1 = arith.constant 0 : i32
    return %arg0, %c0_i32, %c0_i32_0 : i32, i32, i32
  }
  func.func @transform_1(%arg0: i32) -> (i32, i32) {
    %c0_i32 = arith.constant 0 : i32
    %c0_i32_0 = arith.constant 0 : i32
    %c0_i32_1 = arith.constant 0 : i32
    return %c0_i32, %c0_i32_0 : i32, i32
  }
  func.func @transform_2(%arg0: i32) -> (i32, i32) {
    %c0_i32 = arith.constant 0 : i32
    %c0_i32_0 = arith.constant 0 : i32
    %c0_i32_1 = arith.constant 0 : i32
    return %c0_i32, %c0_i32_0 : i32, i32
  }
  func.func @transform_3(%arg0: i32) -> (i32, i32) {
    %c0_i32 = arith.constant 0 : i32
    %c0_i32_0 = arith.constant 0 : i32
    %c0_i32_1 = arith.constant 0 : i32
    return %c0_i32, %c0_i32_0 : i32, i32
  }
  func.func @transform_4(%arg0: i32) -> (i32, i32) {
    %c0_i32 = arith.constant 0 : i32
    %c0_i32_0 = arith.constant 0 : i32
    %c0_i32_1 = arith.constant 0 : i32
    return %c0_i32, %c0_i32_0 : i32, i32
  }
  func.func @transform_5(%arg0: i32) -> (i32, i32) {
    %c0_i32 = arith.constant 0 : i32
    %c0_i32_0 = arith.constant 0 : i32
    return %arg0, %c0_i32 : i32, i32
  }
}

</mosaic_0001>

<llo_original>
// kernel: tpu_custom_call.1
$region0: #{tpu_custom_call.1}
  #allocation0 [shape = 'u32[]', space=smem, size = 0x4, offset = 0x4, fixed_abs, tag = 'smem constant byte address 0x4 - core index']
  #allocation1 [shape = 'u32[144,128]{1,0:T(1,128)}', space=vmem, size = 0x12000, scoped, tag = 'internal scratch']
  %s0 = inlined_call_operand.hbm [shape: f32[2,8,32], index: 0, kind: input, shape index: {}]
  %s1 = inlined_call_operand.hbm [shape: f32[32,128], index: 1, kind: input, shape index: {}]
  %s2 = inlined_call_operand.vmem [shape: f32[1,128], index: 2, kind: input, shape index: {}]
  %s3 = inlined_call_operand.hbm [shape: f32[128,128], index: 3, kind: input, shape index: {}]
  %s4 = inlined_call_operand.vmem [shape: f32[1,128], index: 4, kind: input, shape index: {}]
  %s5 = inlined_call_operand.hbm [shape: f32[2,128], index: 5, kind: output, shape index: {}]
  %s6 = sld [smem:[#allocation0]]
  $region42: #{tpu_custom_call.1} parent=0
    _
  %s8 = ssub.s32 1, %s6
  %s9 = scalar_select 0, %s8, %s6
  $region1: #{tpu_custom_call.1} parent=0
    #allocation2 [shape = 'u8[8192]{0}', space=vmem, size = 0x2000, scoped, tag = 'input window, operand 0, single buffered']
    #allocation3 [shape = 's32[1]{0}', space=sflag, size = 0x4, scoped, tag = 'scoped memory for tpu_custom_call.1']
    #allocation4 [shape = 's32[1]{0}', space=sflag, size = 0x4, scoped, tag = 'scoped memory for tpu_custom_call.1']
    #allocation5 [shape = 'u8[16384]{0}', space=vmem, size = 0x4000, scoped, tag = 'input window, operand 1, single buffered']
    #allocation6 [shape = 's32[1]{0}', space=sflag, size = 0x4, scoped, tag = 'scoped memory for tpu_custom_call.1']
    #allocation7 [shape = 'u8[65536]{0}', space=vmem, size = 0x10000, scoped, tag = 'input window, operand 3, single buffered']
    #allocation8 [shape = 'u8[1024]{0}', space=vmem, size = 0x400, scoped, tag = 'output window, operand 0, single buffered']
    %10 = vsyncpa [#allocation3], 0
    %11 = vsyncpa [#allocation6], 0
    %12 = vsyncpa [#allocation4], 0
    // Predicated region
    $region2: #{tpu_custom_call.1} parent=1 // pred_check
      _
    $region3: #{tpu_custom_call.1} parent=1 // pred_check_branch
      %14 = sbr.rel (0) target = $region5
    $region4: #{tpu_custom_call.1} parent=1 // pred_region
      %s16 = ssub.s32 256, 256
      %17 = vsyncadd [#allocation3], %s16
      %s18 = sshll.u32 [#allocation2], 4
      %s19 = int_to_ptr.vmem [resolvable:$true] %s18
      %24 = dma.hbm_to_vmem [thread:$0]  %s0, 256, %s19, [#allocation3], 128, 128, 8
    $region5: #{tpu_custom_call.1} parent=1 // pred_fallthru
      _
    // Predicated region
    $region6: #{tpu_custom_call.1} parent=1 // pred_check
      _
    $region7: #{tpu_custom_call.1} parent=1 // pred_check_branch
      %26 = sbr.rel (0) target = $region9
    $region8: #{tpu_custom_call.1} parent=1 // pred_region
      %s28 = ssub.s32 512, 512
      %29 = vsyncadd [#allocation6], %s28
      %s30 = sshll.u32 [#allocation5], 4
      %s31 = int_to_ptr.vmem [resolvable:$true] %s30
      %36 = dma.hbm_to_vmem [thread:$0]  %s1, 512, %s31, [#allocation6], 128, 128, 8
    $region9: #{tpu_custom_call.1} parent=1 // pred_fallthru
      _
    // Predicated region
    $region10: #{tpu_custom_call.1} parent=1 // pred_check
      _
    $region11: #{tpu_custom_call.1} parent=1 // pred_check_branch
      %38 = sbr.rel (0) target = $region13
    $region12: #{tpu_custom_call.1} parent=1 // pred_region
      _
    $region13: #{tpu_custom_call.1} parent=1 // pred_fallthru
      _
    // Predicated region
    $region14: #{tpu_custom_call.1} parent=1 // pred_check
      _
    $region15: #{tpu_custom_call.1} parent=1 // pred_check_branch
      %40 = sbr.rel (0) target = $region17
    $region16: #{tpu_custom_call.1} parent=1 // pred_region
      %s42 = ssub.s32 2048, 2048
      %43 = vsyncadd [#allocation6], %s42
      %s44 = sshll.u32 [#allocation7], 4
      %s45 = int_to_ptr.vmem [resolvable:$true] %s44
      %50 = dma.hbm_to_vmem [thread:$0]  %s3, 2048, %s45, [#allocation6], 128, 128, 8
    $region17: #{tpu_custom_call.1} parent=1 // pred_fallthru
      _
    // Predicated region
    $region18: #{tpu_custom_call.1} parent=1 // pred_check
      _
    $region19: #{tpu_custom_call.1} parent=1 // pred_check_branch
      %52 = sbr.rel (0) target = $region21
    $region20: #{tpu_custom_call.1} parent=1 // pred_region
      _
    $region21: #{tpu_custom_call.1} parent=1 // pred_fallthru
      _
    // Predicated region
    $region22: #{tpu_custom_call.1} parent=1 // pred_check
      _
    $region23: #{tpu_custom_call.1} parent=1 // pred_check_branch
      %54 = sbr.rel (0) target = $region25
    $region24: #{tpu_custom_call.1} parent=1 // pred_region
      %55 = dma.done [#allocation3], 256
    $region25: #{tpu_custom_call.1} parent=1 // pred_fallthru
      _
    // Predicated region
    $region26: #{tpu_custom_call.1} parent=1 // pred_check
      _
    $region27: #{tpu_custom_call.1} parent=1 // pred_check_branch
      %57 = sbr.rel (0) target = $region29
    $region28: #{tpu_custom_call.1} parent=1 // pred_region
      %58 = dma.done [#allocation6], 512
    $region29: #{tpu_custom_call.1} parent=1 // pred_fallthru
      _
    // Predicated region
    $region30: #{tpu_custom_call.1} parent=1 // pred_check
      _
    $region31: #{tpu_custom_call.1} parent=1 // pred_check_branch
      %60 = sbr.rel (0) target = $region33
    $region32: #{tpu_custom_call.1} parent=1 // pred_region
      %61 = dma.done [#allocation6], 2048
    $region33: #{tpu_custom_call.1} parent=1 // pred_fallthru
      _
    %v62 = vld [vmem:[#allocation2] sm:$0xff]
    %v63 = vld [vmem:[#allocation2 + $0x8] sm:$0xff]
    %v64 = vmax.f32 %v62, 0.0
    %v65 = vmax.f32 %v63, 0.0
    %v66 = vld [vmem:[#allocation5] sm:$0xff]
    %v67 = vld [vmem:[#allocation5 + $0x8] sm:$0xff]
    %v68 = vld [vmem:[#allocation5 + $0x10] sm:$0xff]
    %v69 = vld [vmem:[#allocation5 + $0x18] sm:$0xff]
    %v70 = vld [vmem:[%s2] sm:$0x1]
    %v72 = vlaneseq
    %v73 = vshrl.u32 %v72, 7
    %v74 = vsub.s32 0, %v73
    %v75 = vrot.slane %v70, %v74
    %vm77 = vcmask 261120
    %v79 = vsel %vm77, %v64, 0
    %v82 = vsel %vm77, %v65, 0
    %84 = vmatprep.subr.mxu0 0.0
    %85 = vmatpush1.msra.mxu0 %v66
    %86 = vmatprep.subr.mxu0 0.0
    %87 = vmatpush1.msra.mxu0 %v67
    %88 = vmatprep.subr.mxu0 0.0
    %89 = vmatpush1.msra.mxu0 %v68
    %90 = vmatprep.subr.mxu0 0.0
    %91 = vmatpush1.msra.mxu0 %v69
    %92 = vmatprep.subr.mxu0 0.0
    %93 = vmatpush1.msra.mxu0 0.0
    %94 = vmatprep.subr.mxu0 0.0
    %95 = vmatpush1.msra.mxu0 0.0
    %96 = vmatprep.subr.mxu0 0.0
    %97 = vmatpush1.msra.mxu0 0.0
    %98 = vmatprep.subr.mxu0 0.0
    %99 = vmatpush1.msra.mxu0 0.0
    %100 = vmatprep.subr.mxu0 0.0
    %101 = vmatpush1.msra.mxu0 0.0
    %102 = vmatprep.subr.mxu0 0.0
    %103 = vmatpush1.msra.mxu0 0.0
    %104 = vmatprep.subr.mxu0 0.0
    %105 = vmatpush1.msra.mxu0 0.0
    %106 = vmatprep.subr.mxu0 0.0
    %107 = vmatpush1.msra.mxu0 0.0
    %108 = vmatprep.subr.mxu0 0.0
    %109 = vmatpush1.msra.mxu0 0.0
    %110 = vmatprep.subr.mxu0 0.0
    %111 = vmatpush1.msra.mxu0 0.0
    %112 = vmatprep.subr.mxu0 0.0
    %113 = vmatpush1.msra.mxu0 0.0
    %114 = vmatprep.subr.mxu0 0.0
    %115 = vmatpush1.msra.mxu0 0.0
    %116 = vmatprep.subr.mxu0 0.0
    %117 = vmatpush1.msra.mxu0 0.0
    %118 = vmatprep.subr.mxu0 0.0
    %119 = vmatpush1.msra.mxu0 0.0
    %120 = vmatprep.subr.mxu0 0.0
    %121 = vmatpush1.msra.mxu0 0.0
    %122 = vmatprep.subr.mxu0 0.0
    %123 = vmatpush1.msra.mxu0 0.0
    %124 = vmatprep.subr.mxu0 0.0
    %125 = vmatpush1.msra.mxu0 0.0
    %126 = vmatprep.subr.mxu0 0.0
    %127 = vmatpush1.msra.mxu0 0.0
    %128 = vmatprep.subr.mxu0 0.0
    %129 = vmatpush1.msra.mxu0 0.0
    %130 = vmatprep.subr.mxu0 0.0
    %131 = vmatpush1.msra.mxu0 0.0
    %132 = vmatprep.subr.mxu0 0.0
    %133 = vmatpush1.msra.mxu0 0.0
    %134 = vmatprep.subr.mxu0 0.0
    %135 = vmatpush1.msra.mxu0 0.0
    %136 = vmatprep.subr.mxu0 0.0
    %137 = vmatpush1.msra.mxu0 0.0
    %138 = vmatprep.subr.mxu0 0.0
    %139 = vmatpush1.msra.mxu0 0.0
    %140 = vmatprep.subr.mxu0 0.0
    %141 = vmatpush1.msra.mxu0 0.0
    %142 = vmatprep.subr.mxu0 0.0
    %143 = vmatpush1.msra.mxu0 0.0
    %144 = vmatprep.subr.mxu0 0.0
    %145 = vmatpush1.msra.mxu0 0.0
    %146 = vmatprep.subr.mxu0 0.0
    %147 = vmatpush1.msra.mxu0 0.0
    %148 = vmatprep.mubr.f32.mxu0 0.0
    %149 = vmatmul.mubr.f32.gmra.mrb[0].mxu0 %v79
    %v150 = vpop.f32.mrb[0].mxu0
    %v151 = vadd.f32 %v75, %v150
    %v152 = vpop.f32.mrb[0].mxu0
    %153 = vmatprep.mubr.f32.mxu0 0.0
    %154 = vmatmul.mubr.f32.gmra.mrb[0].mxu0 %v82
    %v155 = vpop.f32.mrb[0].mxu0
    %v156 = vadd.f32 %v75, %v155
    %v157 = vpop.f32.mrb[0].mxu0
    %158 = vdwg.mxu0
    %v159 = vmax.f32 %v151, 0.0
    %v160 = vmax.f32 %v156, 0.0
    %v161 = vrot.slane %v159, 4
    %v162 = vadd.f32 %v159, %v161
    %v163 = vrot.slane %v162, 2
    %v164 = vadd.f32 %v162, %v163
    %v165 = vrot.slane %v164, 1
    %v166 = vadd.f32 %v164, %v165
    %v167 = vrot.slane %v160, 4
    %v168 = vadd.f32 %v160, %v167
    %v169 = vrot.slane %v168, 2
    %v170 = vadd.f32 %v168, %v169
    %v171 = vrot.slane %v170, 1
    %v172 = vadd.f32 %v170, %v171
    %v173 = vrcp.pop 8.0
    %v174 = vmul.f32 %v166, %v173
    %v175 = vmul.f32 %v172, %v173
    %v176 = vld [vmem:[#allocation7] sm:$0xff]
    %v177 = vld [vmem:[#allocation7 + $0x8] sm:$0xff]
    %v178 = vld [vmem:[#allocation7 + $0x10] sm:$0xff]
    %v179 = vld [vmem:[#allocation7 + $0x18] sm:$0xff]
    %v180 = vld [vmem:[#allocation7 + $0x20] sm:$0xff]
    %v181 = vld [vmem:[#allocation7 + $0x28] sm:$0xff]
    %v182 = vld [vmem:[#allocation7 + $0x30] sm:$0xff]
    %v183 = vld [vmem:[#allocation7 + $0x38] sm:$0xff]
    %v184 = vld [vmem:[#allocation7 + $0x40] sm:$0xff]
    %v185 = vld [vmem:[#allocation7 + $0x48] sm:$0xff]
    %v186 = vld [vmem:[#allocation7 + $0x50] sm:$0xff]
    %v187 = vld [vmem:[#allocation7 + $0x58] sm:$0xff]
    %v188 = vld [vmem:[#allocation7 + $0x60] sm:$0xff]
    %v189 = vld [vmem:[#allocation7 + $0x68] sm:$0xff]
    %v190 = vld [vmem:[#allocation7 + $0x70] sm:$0xff]
    %v191 = vld [vmem:[#allocation7 + $0x78] sm:$0xff]
    %v192 = vld [vmem:[%s4] sm:$0x1]
    %v194 = vlaneseq
    %v195 = vshrl.u32 %v194, 7
    %v196 = vsub.s32 0, %v195
    %v197 = vrot.slane %v192, %v196
    %vm201 = vcmask 1041409
    %v202 = vsel %vm201, %v175, %v174
    %204 = vmatprep.subr.mxu0 0.0
    %205 = vmatpush1.msra.mxu0 %v176
    %206 = vmatprep.subr.mxu0 0.0
    %207 = vmatpush1.msra.mxu0 %v177
    %208 = vmatprep.subr.mxu0 0.0
    %209 = vmatpush1.msra.mxu0 %v178
    %210 = vmatprep.subr.mxu0 0.0
    %211 = vmatpush1.msra.mxu0 %v179
    %212 = vmatprep.subr.mxu0 0.0
    %213 = vmatpush1.msra.mxu0 %v180
    %214 = vmatprep.subr.mxu0 0.0
    %215 = vmatpush1.msra.mxu0 %v181
    %216 = vmatprep.subr.mxu0 0.0
    %217 = vmatpush1.msra.mxu0 %v182
    %218 = vmatprep.subr.mxu0 0.0
    %219 = vmatpush1.msra.mxu0 %v183
    %220 = vmatprep.subr.mxu0 0.0
    %221 = vmatpush1.msra.mxu0 %v184
    %222 = vmatprep.subr.mxu0 0.0
    %223 = vmatpush1.msra.mxu0 %v185
    %224 = vmatprep.subr.mxu0 0.0
    %225 = vmatpush1.msra.mxu0 %v186
    %226 = vmatprep.subr.mxu0 0.0
    %227 = vmatpush1.msra.mxu0 %v187
    %228 = vmatprep.subr.mxu0 0.0
    %229 = vmatpush1.msra.mxu0 %v188
    %230 = vmatprep.subr.mxu0 0.0
    %231 = vmatpush1.msra.mxu0 %v189
    %232 = vmatprep.subr.mxu0 0.0
    %233 = vmatpush1.msra.mxu0 %v190
    %234 = vmatprep.subr.mxu0 0.0
    %235 = vmatpush1.msra.mxu0 %v191
    %236 = vmatprep.subr.mxu0 0.0
    %237 = vmatpush1.msra.mxu0 0.0
    %238 = vmatprep.subr.mxu0 0.0
    %239 = vmatpush1.msra.mxu0 0.0
    %240 = vmatprep.subr.mxu0 0.0
    %241 = vmatpush1.msra.mxu0 0.0
    %242 = vmatprep.subr.mxu0 0.0
    %243 = vmatpush1.msra.mxu0 0.0
    %244 = vmatprep.subr.mxu0 0.0
    %245 = vmatpush1.msra.mxu0 0.0
    %246 = vmatprep.subr.mxu0 0.0
    %247 = vmatpush1.msra.mxu0 0.0
    %248 = vmatprep.subr.mxu0 0.0
    %249 = vmatpush1.msra.mxu0 0.0
    %250 = vmatprep.subr.mxu0 0.0
    %251 = vmatpush1.msra.mxu0 0.0
    %252 = vmatprep.subr.mxu0 0.0
    %253 = vmatpush1.msra.mxu0 0.0
    %254 = vmatprep.subr.mxu0 0.0
    %255 = vmatpush1.msra.mxu0 0.0
    %256 = vmatprep.subr.mxu0 0.0
    %257 = vmatpush1.msra.mxu0 0.0
    %258 = vmatprep.subr.mxu0 0.0
    %259 = vmatpush1.msra.mxu0 0.0
    %260 = vmatprep.subr.mxu0 0.0
    %261 = vmatpush1.msra.mxu0 0.0
    %262 = vmatprep.subr.mxu0 0.0
    %263 = vmatpush1.msra.mxu0 0.0
    %264 = vmatprep.subr.mxu0 0.0
    %265 = vmatpush1.msra.mxu0 0.0
    %266 = vmatprep.subr.mxu0 0.0
    %267 = vmatpush1.msra.mxu0 0.0
    %268 = vmatprep.mubr.f32.mxu0 0.0
    %269 = vmatmul.mubr.f32.gmra.mrb[0].mxu0 %v202
    %v270 = vpop.f32.mrb[0].mxu0
    %v271 = vadd.f32 %v197, %v270
    %v272 = vpop.f32.mrb[0].mxu0
    %273 = vdwg.mxu0
    %v274 = vxor.u32 %v271, 2147483648
    %v275 = vmul.f32 %v274, 1.442695
    %v276 = vpow.pop %v275
    %v277 = vadd.f32 %v276, 1.0
    %v278 = vrcp.pop %v277
    %v279 = vmul.f32 1.0, %v278
    %v280 = vmul.f32 %v279, 2.0
    %281 = vst [vmem:[#allocation8] sm:$0x3] %v280
    // Predicated region
    $region34: #{tpu_custom_call.1} parent=1 // pred_check
      _
    $region35: #{tpu_custom_call.1} parent=1 // pred_check_branch
      %283 = sbr.rel (0) target = $region37
    $region36: #{tpu_custom_call.1} parent=1 // pred_region
      %s285 = ssub.s32 32, 32
      %286 = vsyncadd [#allocation4], %s285
      %s288 = sshll.u32 [#allocation8], 4
      %s289 = int_to_ptr.vmem [resolvable:$true] %s288
      %291 = dma.vmem_to_hbm [thread:$0]  %s289, 32, %s5, [#allocation4]
    $region37: #{tpu_custom_call.1} parent=1 // pred_fallthru
      _
    // Predicated region
    $region38: #{tpu_custom_call.1} parent=1 // pred_check
      _
    $region39: #{tpu_custom_call.1} parent=1 // pred_check_branch
      %293 = sbr.rel (0) target = $region41
    $region40: #{tpu_custom_call.1} parent=1 // pred_region
      %294 = dma.done [#allocation4], 32
    $region41: #{tpu_custom_call.1} parent=1 // pred_fallthru
      _
    %295 = vsyncpa [#allocation3], 1
    %296 = vsyncpa [#allocation6], 1
    %297 = vsyncpa [#allocation4], 1

</llo_original>
